<compile_context>
chip_gen: v7x
topology: tpu7x:2x2x1
jax: 0.10.0
libtpu: 0.0.40
codegen_flags: <defaults>
</compile_context>

<pallas_src>
from typing import NamedTuple, Optional

import numpy as np
import jax
import jax.numpy as jnp
from jax import lax
from jax.experimental import pallas as pl
from jax.experimental.pallas import tpu as pltpu


# ----------------------------------------------------------------------------
# Minimal stand-ins for pointneighbor.types.{PntFul, AdjSftSpc}
# ----------------------------------------------------------------------------
class PntFul(NamedTuple):
    cel_mat: jax.Array   # (n_bch, n_dim, n_dim) lattice vectors (rows)
    cel_inv: jax.Array   # (n_bch, n_dim, n_dim)
    cel_rec: jax.Array   # (n_bch, n_dim, n_dim) reciprocal-cell rows
    pbc:     jax.Array   # (n_bch, n_dim) bool
    pos_xyz: jax.Array   # (n_bch, n_pnt, n_dim) cartesian positions
    pos_cel: jax.Array   # (n_bch, n_pnt, n_dim) fractional positions
    ent:     jax.Array   # (n_bch, n_pnt) bool, entity (real-atom) mask
    spc_cel: jax.Array   # (n_bch, n_pnt, n_dim) cell-space offsets (passthrough)


class AdjSftSpc(NamedTuple):
    adj: jax.Array  # (4, n_max) int32, rows = (batch, i, j, shift); -1 padded
    sft: jax.Array  # (n_sft, n_dim) int32 integer cell shifts
    spc: jax.Array  # (n_bch, n_pnt, n_dim)


# ----------------------------------------------------------------------------
# Pallas kernel: per (batch, shift, i-tile) validity mask
# ----------------------------------------------------------------------------
def _choose_tile_i(n_pnt: int, max_tile: int = 512) -> int:
    """Pick an i-tile that is a multiple of 32 (int8 sublane packing) and
    divides n_pnt; otherwise fall back to the full extent (always legal)."""
    for t in (max_tile, 256, 128, 64, 32):
        if t <= n_pnt and n_pnt % t == 0:
            return t
    return n_pnt


def _make_val_kernel(rc2: float, s_zero: int, tile_i: int, n_pnt: int, n_dim: int):
    def kernel(pos_i_ref, pos_j_ref, ent_i_ref, ent_j_ref, val_ref):
        s = pl.program_id(1)
        it = pl.program_id(2)

        pos_i = pos_i_ref[0]        # (tile_i, n_dim)
        pos_j = pos_j_ref[0, 0]     # (n_dim, n_pnt); shift already folded in

        # Three lane-dense 2-D passes instead of an (i, j, n_dim) intermediate.
        sod = jnp.zeros((tile_i, n_pnt), jnp.float32)
        for d in range(n_dim):                       # static unroll (n_dim = 3)
            dx = pos_j[d:d + 1, :] - pos_i[:, d:d + 1]   # (tile_i, n_pnt)
            sod = sod + dx * dx

        ent_i = ent_i_ref[0] > 0    # (tile_i, 1)
        ent_j = ent_j_ref[0] > 0    # (1, n_pnt)
        val = (sod <= rc2) & ent_i & ent_j

        # Self-image (i == j at the zero shift) exclusion, gated so the iota /
        # compare work only happens on the zero-shift grid steps.
        @pl.when(s == s_zero)
        def _():
            ri = it * tile_i + lax.broadcasted_iota(jnp.int32, (tile_i, n_pnt), 0)
            ci = lax.broadcasted_iota(jnp.int32, (tile_i, n_pnt), 1)
            val_ref[0, 0, :, :] = (val & (ri != ci)).astype(jnp.int8)

        @pl.when(s != s_zero)
        def _():
            val_ref[0, 0, :, :] = val.astype(jnp.int8)

    return kernel


def _pairwise_val(pos_xyz, ent, sft_xyz, rc, s_zero):
    """Returns val (n_bch, n_sft, n_pnt, n_pnt) int8 validity mask."""
    n_bch, n_pnt, n_dim = pos_xyz.shape
    n_sft = sft_xyz.shape[1]

    pos_f = pos_xyz.astype(jnp.float32)
    sft_f = sft_xyz.astype(jnp.float32)
    # pos_js[b, s, d, j] = pos[b, j, d] + sft[b, s, d]  (lane-dense over j).
    pos_js = jnp.transpose(pos_f, (0, 2, 1))[:, None, :, :] + sft_f[:, :, :, None]

    ent_i = ent.astype(jnp.int32)[:, :, None]   # (n_bch, n_pnt, 1) column mask
    ent_j = ent.astype(jnp.int32)[:, None, :]   # (n_bch, 1, n_pnt) row mask

    tile_i = _choose_tile_i(n_pnt)
    n_it = n_pnt // tile_i
    kernel = _make_val_kernel(float(rc) ** 2, int(s_zero), tile_i, n_pnt, n_dim)

    # Rough per-step VMEM (with (8,128) padding), x2 for double buffering.
    per_step = (max(tile_i, 32) * max(n_pnt, 128)      # int8 out tile
                + tile_i * 128 * 4                      # pos_i tile
                + 8 * max(n_pnt, 128) * 4               # pos_j tile
                + tile_i * 128 * 4                      # ent_i
                + 8 * max(n_pnt, 128) * 4)              # ent_j
    # TODO(synk): very large n_pnt (j untiled) would need j tiling too; on v7x
    # keep the limit below 64 MiB physical VMEM.
    vmem_limit = int(min(max(4 * per_step, 32 << 20), 96 << 20))

    val = pl.pallas_call(
        kernel,
        out_shape=jax.ShapeDtypeStruct((n_bch, n_sft, n_pnt, n_pnt), jnp.int8),
        grid=(n_bch, n_sft, n_it),
        in_specs=[
            pl.BlockSpec((1, tile_i, n_dim),   lambda b, s, it: (b, it, 0)),  # pos_i
            pl.BlockSpec((1, 1, n_dim, n_pnt), lambda b, s, it: (b, s, 0, 0)),  # pos_j + sft
            pl.BlockSpec((1, tile_i, 1),       lambda b, s, it: (b, it, 0)),  # ent_i
            pl.BlockSpec((1, 1, n_pnt),        lambda b, s, it: (b, 0, 0)),   # ent_j
        ],
        out_specs=pl.BlockSpec((1, 1, tile_i, n_pnt),
                               lambda b, s, it: (b, s, it, 0)),
        compiler_params=pltpu.CompilerParams(
            dimension_semantics=("parallel", "parallel", "parallel"),
            vmem_limit_bytes=vmem_limit),
    )(pos_f, pos_js, ent_i, ent_j)
    return val


# ----------------------------------------------------------------------------
# Glue: shift grid construction + COO extraction
# ----------------------------------------------------------------------------
def _build_shift_grid(pe: PntFul, rc: float):
    """fn.minimum_neighbor + cartesian shift grid.

    Done host-side with numpy: the number of shifts is data dependent and the
    TPU kernel needs static shapes.
    """
    n_dim = pe.pos_xyz.shape[-1]
    cel_rec = np.asarray(pe.cel_rec, dtype=np.float64)
    pbc = np.asarray(pe.pbc)
    rec_len = np.linalg.norm(cel_rec, axis=-1)                   # (n_bch, n_dim)
    num_rpt = np.where(pbc, np.ceil(rc * rec_len), 0.0).astype(np.int64)
    max_rpt = num_rpt.max(axis=0)                                # (n_dim,)
    axes = [np.arange(-int(m), int(m) + 1, dtype=np.int64) for m in max_rpt]
    mesh = np.meshgrid(*axes, indexing="ij")
    sft_cel = np.stack(mesh, axis=-1).reshape(-1, n_dim)         # (n_sft, n_dim)
    s_zero = int(np.nonzero(np.all(sft_cel == 0, axis=1))[0][0])
    return sft_cel, s_zero


def coo2_ful_simple(pe: PntFul, rc: float,
                    adj_size: Optional[int] = None) -> AdjSftSpc:
    pos_xyz = pe.pos_xyz
    n_bch, n_pnt, n_dim = pos_xyz.shape

    sft_cel, s_zero = _build_shift_grid(pe, rc)
    sft_cel_j = jnp.asarray(sft_cel, dtype=jnp.int32)
    sft_xyz = jnp.einsum("sd,bde->bse",
                         sft_cel_j.astype(pos_xyz.dtype), pe.cel_mat)

    # (n_bch, n_sft, n_pnt_i, n_pnt_j) int8 validity mask from the Pallas kernel.
    val = _pairwise_val(pos_xyz, pe.ent, sft_xyz, rc, s_zero)

    # TODO(synk): torch uses msk.nonzero() which returns a dynamic shape; on
    # TPU/XLA we pad to a static size (worst case by default) with fill -1.
    if adj_size is None:
        adj_size = int(n_bch * n_pnt * n_pnt * sft_cel.shape[0])

    # Run nonzero directly on the kernel layout (avoids a full HBM transpose of
    # val) and reorder the rows to torch's (b, i, j, s).
    # TODO(synk): adj columns are ordered by (b, s, i, j) iteration, not by
    # torch's (b, i, j, s) nonzero order; the edge set is identical.
    b_idx, s_idx, i_idx, j_idx = jnp.nonzero(val > 0, size=adj_size, fill_value=-1)
    adj = jnp.stack([b_idx, i_idx, j_idx, s_idx]).astype(jnp.int32)   # (4, adj_size)

    return AdjSftSpc(adj=adj, sft=sft_cel_j, spc=pe.spc_cel)


class Coo2FulSimple:
    def __init__(self, rc: float, adj_size: Optional[int] = None):
        self.rc = rc
        self.adj_size = adj_size

    def __call__(self, pe: PntFul) -> AdjSftSpc:
        return coo2_ful_simple(pe, self.rc, self.adj_size)


# ----------------------------------------------------------------------------
# Example inputs + self check
# ----------------------------------------------------------------------------
def make_pnt_ful(key, n_bch=2, n_pnt=8, n_dim=3):
    cell_lengths = jnp.asarray([6.0, 7.0], dtype=jnp.float32)
    cel_mat = jnp.eye(n_dim, dtype=jnp.float32)[None] * cell_lengths[:, None, None]
    cel_inv = jnp.linalg.inv(cel_mat)
    cel_rec = jnp.transpose(cel_inv, (0, 2, 1))
    pbc = jnp.ones((n_bch, n_dim), dtype=bool)
    pos_cel = jax.random.uniform(key, (n_bch, n_pnt, n_dim), dtype=jnp.float32)
    pos_xyz = jnp.einsum("bpd,bde->bpe", pos_cel, cel_mat)
    ent = jnp.ones((n_bch, n_pnt), dtype=bool).at[1, -1].set(False)  # one padded atom
    spc_cel = jnp.zeros((n_bch, n_pnt, n_dim), dtype=jnp.float32)
    return PntFul(cel_mat, cel_inv, cel_rec, pbc, pos_xyz, pos_cel, ent, spc_cel)


if __name__ == "__main__":
    rc = 3.0
    key = jax.random.PRNGKey(0)
    pe = make_pnt_ful(key)
    n_bch, n_pnt, n_dim = pe.pos_xyz.shape

    module = Coo2FulSimple(rc=rc)
    out = module(pe)
    jax.block_until_ready(out.adj)
    jax.block_until_ready(out.sft)
    jax.block_until_ready(out.spc)

    # --- sanity check of the Pallas hot path against a pure-JAX reference ----
    sft_cel, s_zero = _build_shift_grid(pe, rc)
    n_sft = sft_cel.shape[0]
    sft_xyz = jnp.einsum("sd,bde->bse",
                         jnp.asarray(sft_cel, pe.pos_xyz.dtype), pe.cel_mat)
    val_k = _pairwise_val(pe.pos_xyz, pe.ent, sft_xyz, rc, s_zero)   # (b,s,i,j)

    pos = pe.pos_xyz.astype(jnp.float32)
    sftf = sft_xyz.astype(jnp.float32)
    sod_r = jnp.zeros((n_bch, n_pnt, n_pnt, n_sft), jnp.float32)
    for d in range(n_dim):   # same per-coordinate accumulation order as kernel
        dxr = (pos[:, None, :, None, d] + sftf[:, None, None, :, d]
               ) - pos[:, :, None, None, d]
        sod_r = sod_r + dxr * dxr
    ent_i = pe.ent[:, :, None, None]
    ent_j = pe.ent[:, None, :, None]
    eye = jnp.eye(n_pnt, dtype=bool)[None, :, :, None]
    zero_s = (jnp.arange(n_sft)[None, None, None, :] == s_zero)
    val_r = (sod_r <= rc * rc) & ent_i & ent_j & ~(eye & zero_s)     # (b,i,j,s)

    np.testing.assert_array_equal(
        np.asarray(jnp.transpose(val_k, (0, 2, 3, 1)) > 0), np.asarray(val_r))

    # --- check the emitted COO edge set matches the reference ----------------
    ref_edges = set(map(tuple, np.argwhere(np.asarray(val_r)).tolist()))
    adj_np = np.asarray(out.adj).T
    adj_np = adj_np[adj_np[:, 0] >= 0]          # drop -1 padding
    adj_edges = set(map(tuple, adj_np.tolist()))
    assert ref_edges == adj_edges, "COO edge set mismatch"
    assert np.array_equal(np.asarray(out.sft), sft_cel)

    print("KERNEL_OK")
</pallas_src>

<mosaic_0001>
module attributes {stable_mosaic.version = 11 : i64} {
  func.func @kernel(%arg0: i32, %arg1: i32, %arg2: i32, %arg3: memref<1x8x3xf32, #tpu.memory_space<vmem>>, %arg4: memref<1x1x3x8xf32, #tpu.memory_space<vmem>>, %arg5: memref<1x8x1xi32, #tpu.memory_space<vmem>>, %arg6: memref<1x1x8xi32, #tpu.memory_space<vmem>>, %arg7: memref<1x1x8x8xi8, #tpu.memory_space<vmem>>) attributes {dimension_semantics = [#tpu.dimension_semantics<parallel>, #tpu.dimension_semantics<parallel>, #tpu.dimension_semantics<parallel>], iteration_bounds = array<i64: 2, 27, 1>, scalar_prefetch = 0 : i64, scratch_operands = 0 : i64, tpu.core_type = #tpu.core_type<tc>, window_params = [{transform_indices = @transform_0, window_bounds = array<i64: 1, 8, 3>}, {transform_indices = @transform_1, window_bounds = array<i64: 1, 1, 3, 8>}, {transform_indices = @transform_2, window_bounds = array<i64: 1, 8, 1>}, {transform_indices = @transform_3, window_bounds = array<i64: 1, 1, 8>}, {transform_indices = @transform_4, window_bounds = array<i64: 1, 1, 8, 8>}]} {
    %c0 = arith.constant 0 : index
    %c0_0 = arith.constant 0 : index
    %c0_1 = arith.constant 0 : index
    %0 = vector.load %arg3[%c0, %c0_0, %c0_1] : memref<1x8x3xf32, #tpu.memory_space<vmem>>, vector<1x8x3xf32>
    %1 = vector.shape_cast %0 : vector<1x8x3xf32> to vector<8x3xf32>
    %c0_2 = arith.constant 0 : index
    %c0_3 = arith.constant 0 : index
    %c0_4 = arith.constant 0 : index
    %c0_5 = arith.constant 0 : index
    %2 = vector.load %arg4[%c0_2, %c0_3, %c0_4, %c0_5] : memref<1x1x3x8xf32, #tpu.memory_space<vmem>>, vector<1x1x3x8xf32>
    %3 = vector.shape_cast %2 : vector<1x1x3x8xf32> to vector<3x8xf32>
    %cst = arith.constant 0.000000e+00 : f32
    %4 = vector.broadcast %cst : f32 to vector<8x8xf32>
    %5 = vector.extract_strided_slice %3 {offsets = [0, 0], sizes = [1, 8], strides = [1, 1]} : vector<3x8xf32> to vector<1x8xf32>
    %6 = vector.extract_strided_slice %1 {offsets = [0, 0], sizes = [8, 1], strides = [1, 1]} : vector<8x3xf32> to vector<8x1xf32>
    %7 = vector.broadcast %5 : vector<1x8xf32> to vector<8x8xf32>
    %8 = vector.broadcast %6 : vector<8x1xf32> to vector<8x8xf32>
    %9 = arith.subf %7, %8 : vector<8x8xf32>
    %10 = arith.mulf %9, %9 : vector<8x8xf32>
    %11 = arith.addf %4, %10 : vector<8x8xf32>
    %12 = vector.extract_strided_slice %3 {offsets = [1, 0], sizes = [1, 8], strides = [1, 1]} : vector<3x8xf32> to vector<1x8xf32>
    %13 = vector.extract_strided_slice %1 {offsets = [0, 1], sizes = [8, 1], strides = [1, 1]} : vector<8x3xf32> to vector<8x1xf32>
    %14 = vector.broadcast %12 : vector<1x8xf32> to vector<8x8xf32>
    %15 = vector.broadcast %13 : vector<8x1xf32> to vector<8x8xf32>
    %16 = arith.subf %14, %15 : vector<8x8xf32>
    %17 = arith.mulf %16, %16 : vector<8x8xf32>
    %18 = arith.addf %11, %17 : vector<8x8xf32>
    %19 = vector.extract_strided_slice %3 {offsets = [2, 0], sizes = [1, 8], strides = [1, 1]} : vector<3x8xf32> to vector<1x8xf32>
    %20 = vector.extract_strided_slice %1 {offsets = [0, 2], sizes = [8, 1], strides = [1, 1]} : vector<8x3xf32> to vector<8x1xf32>
    %21 = vector.broadcast %19 : vector<1x8xf32> to vector<8x8xf32>
    %22 = vector.broadcast %20 : vector<8x1xf32> to vector<8x8xf32>
    %23 = arith.subf %21, %22 : vector<8x8xf32>
    %24 = arith.mulf %23, %23 : vector<8x8xf32>
    %25 = arith.addf %18, %24 : vector<8x8xf32>
    %c0_6 = arith.constant 0 : index
    %c0_7 = arith.constant 0 : index
    %c0_8 = arith.constant 0 : index
    %26 = vector.load %arg5[%c0_6, %c0_7, %c0_8] : memref<1x8x1xi32, #tpu.memory_space<vmem>>, vector<1x8x1xi32>
    %27 = vector.shape_cast %26 : vector<1x8x1xi32> to vector<8x1xi32>
    %c0_i32 = arith.constant 0 : i32
    %28 = vector.broadcast %c0_i32 : i32 to vector<8x1xi32>
    %29 = arith.cmpi sgt, %27, %28 : vector<8x1xi32>
    %c0_9 = arith.constant 0 : index
    %c0_10 = arith.constant 0 : index
    %c0_11 = arith.constant 0 : index
    %30 = vector.load %arg6[%c0_9, %c0_10, %c0_11] : memref<1x1x8xi32, #tpu.memory_space<vmem>>, vector<1x1x8xi32>
    %31 = vector.shape_cast %30 : vector<1x1x8xi32> to vector<1x8xi32>
    %c0_i32_12 = arith.constant 0 : i32
    %32 = vector.broadcast %c0_i32_12 : i32 to vector<1x8xi32>
    %33 = arith.cmpi sgt, %31, %32 : vector<1x8xi32>
    %cst_13 = arith.constant 9.000000e+00 : f32
    %34 = vector.broadcast %cst_13 : f32 to vector<8x8xf32>
    %35 = arith.cmpf ole, %25, %34 : vector<8x8xf32>
    %36 = vector.broadcast %29 : vector<8x1xi1> to vector<8x8xi1>
    %37 = arith.andi %35, %36 : vector<8x8xi1>
    %38 = vector.broadcast %33 : vector<1x8xi1> to vector<8x8xi1>
    %39 = arith.andi %37, %38 : vector<8x8xi1>
    %c13_i32 = arith.constant 13 : i32
    %40 = arith.cmpi eq, %arg1, %c13_i32 : i32
    %41 = arith.extui %40 : i1 to i32
    %c0_i32_14 = arith.constant 0 : i32
    %42 = arith.cmpi ne, %41, %c0_i32_14 : i32
    scf.if %42 {
      %c8_i32 = arith.constant 8 : i32
      %46 = arith.muli %arg2, %c8_i32 : i32
      %47 = tpu.iota {dimensions = array<i32: 0>} : vector<8x8xi32>
      %48 = vector.broadcast %46 : i32 to vector<8x8xi32>
      %49 = arith.addi %48, %47 : vector<8x8xi32>
      %50 = tpu.iota {dimensions = array<i32: 1>} : vector<8x8xi32>
      %51 = arith.cmpi ne, %49, %50 : vector<8x8xi32>
      %52 = arith.andi %39, %51 : vector<8x8xi1>
      %53 = arith.extui %52 : vector<8x8xi1> to vector<8x8xi8>
      %c0_17 = arith.constant 0 : index
      %c0_18 = arith.constant 0 : index
      %c0_19 = arith.constant 0 : index
      %c0_20 = arith.constant 0 : index
      %54 = vector.load %arg7[%c0_17, %c0_18, %c0_19, %c0_20] : memref<1x1x8x8xi8, #tpu.memory_space<vmem>>, vector<1x1x8x8xi8>
      %55 = vector.shape_cast %54 : vector<1x1x8x8xi8> to vector<8x8xi8>
      %56 = vector.shape_cast %53 : vector<8x8xi8> to vector<1x1x8x8xi8>
      tpu.vector_store %arg7[%c0_17, %c0_18, %c0_19, %c0_20], %56 {strides = array<i32>} : memref<1x1x8x8xi8, #tpu.memory_space<vmem>>, vector<1x1x8x8xi8>,
    } else {
    }
    %c13_i32_15 = arith.constant 13 : i32
    %43 = arith.cmpi ne, %arg1, %c13_i32_15 : i32
    %44 = arith.extui %43 : i1 to i32
    %c0_i32_16 = arith.constant 0 : i32
    %45 = arith.cmpi ne, %44, %c0_i32_16 : i32
    scf.if %45 {
      %46 = arith.extui %39 : vector<8x8xi1> to vector<8x8xi8>
      %c0_17 = arith.constant 0 : index
      %c0_18 = arith.constant 0 : index
      %c0_19 = arith.constant 0 : index
      %c0_20 = arith.constant 0 : index
      %47 = vector.load %arg7[%c0_17, %c0_18, %c0_19, %c0_20] : memref<1x1x8x8xi8, #tpu.memory_space<vmem>>, vector<1x1x8x8xi8>
      %48 = vector.shape_cast %47 : vector<1x1x8x8xi8> to vector<8x8xi8>
      %49 = vector.shape_cast %46 : vector<8x8xi8> to vector<1x1x8x8xi8>
      tpu.vector_store %arg7[%c0_17, %c0_18, %c0_19, %c0_20], %49 {strides = array<i32>} : memref<1x1x8x8xi8, #tpu.memory_space<vmem>>, vector<1x1x8x8xi8>,
    } else {
    }
    return
  }
  func.func @transform_0(%arg0: i32, %arg1: i32, %arg2: i32) -> (i32, i32, i32) {
    %c0_i32 = arith.constant 0 : i32
    %c0_i32_0 = arith.constant 0 : i32
    return %arg0, %arg2, %c0_i32 : i32, i32, i32
  }
  func.func @transform_1(%arg0: i32, %arg1: i32, %arg2: i32) -> (i32, i32, i32, i32) {
    %c0_i32 = arith.constant 0 : i32
    %c0_i32_0 = arith.constant 0 : i32
    %c0_i32_1 = arith.constant 0 : i32
    return %arg0, %arg1, %c0_i32, %c0_i32_0 : i32, i32, i32, i32
  }
  func.func @transform_2(%arg0: i32, %arg1: i32, %arg2: i32) -> (i32, i32, i32) {
    %c0_i32 = arith.constant 0 : i32
    %c0_i32_0 = arith.constant 0 : i32
    return %arg0, %arg2, %c0_i32 : i32, i32, i32
  }
  func.func @transform_3(%arg0: i32, %arg1: i32, %arg2: i32) -> (i32, i32, i32) {
    %c0_i32 = arith.constant 0 : i32
    %c0_i32_0 = arith.constant 0 : i32
    %c0_i32_1 = arith.constant 0 : i32
    return %arg0, %c0_i32, %c0_i32_0 : i32, i32, i32
  }
  func.func @transform_4(%arg0: i32, %arg1: i32, %arg2: i32) -> (i32, i32, i32, i32) {
    %c0_i32 = arith.constant 0 : i32
    %c0_i32_0 = arith.constant 0 : i32
    return %arg0, %arg1, %arg2, %c0_i32 : i32, i32, i32, i32
  }
}

</mosaic_0001>

<llo_original>
// kernel: tpu_custom_call.1
$region0: #{tpu_custom_call.1}
  #allocation0 [shape = 'u32[]', space=smem, size = 0x4, offset = 0x4, fixed_abs, tag = 'smem constant byte address 0x4 - core index']
  #allocation1 [shape = 'u32[144,128]{1,0:T(1,128)}', space=vmem, size = 0x12000, scoped, tag = 'internal scratch']
  %s0 = inlined_call_operand.vmem [shape: f32[2,8,3], index: 0, kind: input, shape index: {}]
  %s1 = inlined_call_operand.vmem [shape: f32[2,27,3,8], index: 1, kind: input, shape index: {}]
  %s2 = inlined_call_operand.vmem [shape: s32[2,8,1], index: 2, kind: input, shape index: {}]
  %s3 = inlined_call_operand.vmem [shape: s32[2,1,8], index: 3, kind: input, shape index: {}]
  %s4 = inlined_call_operand.vmem [shape: s8[2,27,8,8], index: 4, kind: output, shape index: {}]
  %s5 = sld [smem:[#allocation0]]
  $region57: #{tpu_custom_call.1} parent=0
    _
  %s7 = ssub.s32 1, %s5
  %s8 = scalar_select 0, %s7, %s5
  loop: start=0, step=1, limit=56
  $region2: #{tpu_custom_call.1} parent=0 // loop_pre_header
    _
  $region3: #{tpu_custom_call.1} parent=0 // loop_header
    %s10 = sphi 0, %s14
    %p11 = scmp.ge.s32.totalorder %s10, 56
    %s17 = sphi 0, %s36
    %s18 = sphi 0, %s32
    %s19 = sphi 0, %s28
    %s20 = sphi 0, %s17
    %s21 = sphi 0, %s18
    %s22 = sphi 0, %s19
    %s23 = sphi 0, %s20
    %s24 = sphi 0, %s21
    %s25 = sphi 0, %s22
    %s41 = sphi 0, %s43
    %s44 = sphi 0, %s41
    %s45 = sphi 0, %s44
    %s61 = sphi 0, %s45
    %s69 = sphi 0, %s71
    %s72 = sphi 0, %s69
    %s73 = sphi 0, %s72
    %s89 = sphi 0, %s73
    %s97 = sphi 0, %s99
    %s100 = sphi 0, %s97
    %s101 = sphi 0, %s100
    %s117 = sphi 0, %s101
    %s123 = sphi 0, %s125
    %s126 = sphi 0, %s123
    %s127 = sphi 0, %s126
    %s143 = sphi 0, %s127
    %s153 = sphi 0, %s155
    %s156 = sphi 0, %s153
    %s157 = sphi 0, %s156
    %s173 = sphi 0, %s157
  $region4: #{tpu_custom_call.1} parent=0 // loop_header_branch
    %13 = sbr.rel (%p11) target = $region8
  $region5: #{tpu_custom_call.1} parent=0 // loop_body
    %s15 = ssub.s32 %s10, 1
    %s16 = ssub.s32 %s10, 2
    %s26 = sadd.s32 1, %s19
    %p27 = scmp.ge.s32.totalorder %s26, 1
    %s28 = scalar_select %p27, 0, %s26
    %s29 = sadd.s32 1, %s18
    %s30 = scalar_select %p27, %s29, %s18
    %p31 = scmp.ge.s32.totalorder %s30, 27
    %s32 = scalar_select %p31, 0, %s30
    %s33 = sadd.s32 1, %s17
    %s34 = scalar_select %p31, %s33, %s17
    %p35 = scmp.ge.s32.totalorder %s34, 2
    %s36 = scalar_select %p35, 0, %s34
    %s37 = ssub.s32 %s17, %s36
    %s38 = ssub.s32 %s19, %s28
    %s39 = sor.u32 %s37, %s38
    %p40 = scmp.eq.s32.totalorder %s39, 0
    %s42 = sadd.s32 %s41, 1
    %s43 = scalar_select %p40, %s41, %s42
    %p46 = pneg %p40
    %p47 = scmp.eq.s32.totalorder %s10, 53
    %p48 = por %p46, %p47
    %p49 = scmp.ne.s32.totalorder %s41, %s44
    %p50 = scmp.eq.s32.totalorder %s10, 0
    %p51 = por %p49, %p50
    %p52 = scmp.ne.s32.totalorder %s41, %s44
    %p53 = scmp.eq.s32.totalorder %s15, 53
    %p54 = por %p52, %p53
    %p55 = scmp.ne.s32.totalorder %s44, %s45
    %p56 = scmp.eq.s32.totalorder %s15, 0
    %p57 = por %p55, %p56
    %p58 = scmp.ne.s32.totalorder %s44, %s45
    %p59 = scmp.eq.s32.totalorder %s16, 53
    %p60 = por %p58, %p59
    %p62 = scmp.ne.s32.totalorder %s45, %s61
    %p63 = scmp.eq.s32.totalorder %s16, 0
    %p64 = por %p62, %p63
    %s65 = ssub.s32 %s17, %s36
    %s66 = ssub.s32 %s18, %s32
    %s67 = sor.u32 %s65, %s66
    %p68 = scmp.eq.s32.totalorder %s67, 0
    %s70 = sadd.s32 %s69, 1
    %s71 = scalar_select %p68, %s69, %s70
    %p74 = pneg %p68
    %p75 = scmp.eq.s32.totalorder %s10, 53
    %p76 = por %p74, %p75
    %p77 = scmp.ne.s32.totalorder %s69, %s72
    %p78 = scmp.eq.s32.totalorder %s10, 0
    %p79 = por %p77, %p78
    %p80 = scmp.ne.s32.totalorder %s69, %s72
    %p81 = scmp.eq.s32.totalorder %s15, 53
    %p82 = por %p80, %p81
    %p83 = scmp.ne.s32.totalorder %s72, %s73
    %p84 = scmp.eq.s32.totalorder %s15, 0
    %p85 = por %p83, %p84
    %p86 = scmp.ne.s32.totalorder %s72, %s73
    %p87 = scmp.eq.s32.totalorder %s16, 53
    %p88 = por %p86, %p87
    %p90 = scmp.ne.s32.totalorder %s73, %s89
    %p91 = scmp.eq.s32.totalorder %s16, 0
    %p92 = por %p90, %p91
    %s93 = ssub.s32 %s17, %s36
    %s94 = ssub.s32 %s19, %s28
    %s95 = sor.u32 %s93, %s94
    %p96 = scmp.eq.s32.totalorder %s95, 0
    %s98 = sadd.s32 %s97, 1
    %s99 = scalar_select %p96, %s97, %s98
    %p102 = pneg %p96
    %p103 = scmp.eq.s32.totalorder %s10, 53
    %p104 = por %p102, %p103
    %p105 = scmp.ne.s32.totalorder %s97, %s100
    %p106 = scmp.eq.s32.totalorder %s10, 0
    %p107 = por %p105, %p106
    %p108 = scmp.ne.s32.totalorder %s97, %s100
    %p109 = scmp.eq.s32.totalorder %s15, 53
    %p110 = por %p108, %p109
    %p111 = scmp.ne.s32.totalorder %s100, %s101
    %p112 = scmp.eq.s32.totalorder %s15, 0
    %p113 = por %p111, %p112
    %p114 = scmp.ne.s32.totalorder %s100, %s101
    %p115 = scmp.eq.s32.totalorder %s16, 53
    %p116 = por %p114, %p115
    %p118 = scmp.ne.s32.totalorder %s101, %s117
    %p119 = scmp.eq.s32.totalorder %s16, 0
    %p120 = por %p118, %p119
    %s121 = ssub.s32 %s17, %s36
    %p122 = scmp.eq.s32.totalorder %s121, 0
    %s124 = sadd.s32 %s123, 1
    %s125 = scalar_select %p122, %s123, %s124
    %p128 = pneg %p122
    %p129 = scmp.eq.s32.totalorder %s10, 53
    %p130 = por %p128, %p129
    %p131 = scmp.ne.s32.totalorder %s123, %s126
    %p132 = scmp.eq.s32.totalorder %s10, 0
    %p133 = por %p131, %p132
    %p134 = scmp.ne.s32.totalorder %s123, %s126
    %p135 = scmp.eq.s32.totalorder %s15, 53
    %p136 = por %p134, %p135
    %p137 = scmp.ne.s32.totalorder %s126, %s127
    %p138 = scmp.eq.s32.totalorder %s15, 0
    %p139 = por %p137, %p138
    %p140 = scmp.ne.s32.totalorder %s126, %s127
    %p141 = scmp.eq.s32.totalorder %s16, 53
    %p142 = por %p140, %p141
    %p144 = scmp.ne.s32.totalorder %s127, %s143
    %p145 = scmp.eq.s32.totalorder %s16, 0
    %p146 = por %p144, %p145
    %s147 = ssub.s32 %s17, %s36
    %s148 = ssub.s32 %s18, %s32
    %s149 = sor.u32 %s147, %s148
    %s150 = ssub.s32 %s19, %s28
    %s151 = sor.u32 %s149, %s150
    %p152 = scmp.eq.s32.totalorder %s151, 0
    %s154 = sadd.s32 %s153, 1
    %s155 = scalar_select %p152, %s153, %s154
    %p158 = pneg %p152
    %p159 = scmp.eq.s32.totalorder %s10, 53
    %p160 = por %p158, %p159
    %p161 = scmp.ne.s32.totalorder %s153, %s156
    %p162 = scmp.eq.s32.totalorder %s10, 0
    %p163 = por %p161, %p162
    %p164 = scmp.ne.s32.totalorder %s153, %s156
    %p165 = scmp.eq.s32.totalorder %s15, 53
    %p166 = por %p164, %p165
    %p167 = scmp.ne.s32.totalorder %s156, %s157
    %p168 = scmp.eq.s32.totalorder %s15, 0
    %p169 = por %p167, %p168
    %p170 = scmp.ne.s32.totalorder %s156, %s157
    %p171 = scmp.eq.s32.totalorder %s16, 53
    %p172 = por %p170, %p171
    %p174 = scmp.ne.s32.totalorder %s157, %s173
    %p175 = scmp.eq.s32.totalorder %s16, 0
    %p176 = por %p174, %p175
    %p177 = scmp.le.s32.totalorder 1, %s10
    %p178 = scmp.lt.s32.totalorder %s10, 55
    %p179 = pnand %p177, %p178
    %p180 = pneg %p179
    // Predicated region
    $region9: #{tpu_custom_call.1} parent=5 // pred_check
      _
    $region10: #{tpu_custom_call.1} parent=5 // pred_check_branch
      %182 = sbr.rel (%p179) target = $region12
    $region11: #{tpu_custom_call.1} parent=5 // pred_region
      %s183 = ssub.s32 %s10, 1
    $region12: #{tpu_custom_call.1} parent=5 // pred_fallthru
      _
    %p184 = scmp.lt.s32.totalorder %s10, 54
    // Predicated region
    $region13: #{tpu_custom_call.1} parent=5 // pred_check
      %p185 = pneg %p184
    $region14: #{tpu_custom_call.1} parent=5 // pred_check_branch
      %187 = sbr.rel (%p185) target = $region16
    $region15: #{tpu_custom_call.1} parent=5 // pred_region
      // Predicated region
      $region17: #{tpu_custom_call.1} parent=15 // pred_check
        %p188 = pneg %p51
      $region18: #{tpu_custom_call.1} parent=15 // pred_check_branch
        %190 = sbr.rel (%p188) target = $region20
      $region19: #{tpu_custom_call.1} parent=15 // pred_region
        %p191 = scmp.lt.s32.totalorder %s17, 1
        %s192 = scalar_select %p191, %s17, 1
        %p193 = scmp.lt.s32.totalorder %s19, 0
        %s194 = scalar_select %p193, %s19, 0
        %s195 = sadd.s32 %s194, %s192
        %s196 = smul.addr %s195, 8
        %s197 = scalar_lea.vmem %s0, %s196
      $region20: #{tpu_custom_call.1} parent=15 // pred_fallthru
        _
      // Predicated region
      $region21: #{tpu_custom_call.1} parent=15 // pred_check
        %p198 = pneg %p79
      $region22: #{tpu_custom_call.1} parent=15 // pred_check_branch
        %200 = sbr.rel (%p198) target = $region24
      $region23: #{tpu_custom_call.1} parent=15 // pred_region
        %p201 = scmp.lt.s32.totalorder %s17, 1
        %s202 = scalar_select %p201, %s17, 1
        %p203 = scmp.lt.s32.totalorder %s18, 26
        %s204 = scalar_select %p203, %s18, 26
        %s205 = smul.addr %s202, 27
        %s206 = sadd.s32 %s204, %s205
        %s207 = smul.addr %s206, 4
        %s208 = scalar_lea.vmem %s1, %s207
      $region24: #{tpu_custom_call.1} parent=15 // pred_fallthru
        _
      // Predicated region
      $region25: #{tpu_custom_call.1} parent=15 // pred_check
        %p209 = pneg %p107
      $region26: #{tpu_custom_call.1} parent=15 // pred_check_branch
        %211 = sbr.rel (%p209) target = $region28
      $region27: #{tpu_custom_call.1} parent=15 // pred_region
        %p212 = scmp.lt.s32.totalorder %s17, 1
        %s213 = scalar_select %p212, %s17, 1
        %p214 = scmp.lt.s32.totalorder %s19, 0
        %s215 = scalar_select %p214, %s19, 0
        %s216 = sadd.s32 %s215, %s213
        %s217 = smul.addr %s216, 8
        %s218 = scalar_lea.vmem %s2, %s217
      $region28: #{tpu_custom_call.1} parent=15 // pred_fallthru
        _
      // Predicated region
      $region29: #{tpu_custom_call.1} parent=15 // pred_check
        %p219 = pneg %p133
      $region30: #{tpu_custom_call.1} parent=15 // pred_check_branch
        %221 = sbr.rel (%p219) target = $region32
      $region31: #{tpu_custom_call.1} parent=15 // pred_region
        %p222 = scmp.lt.s32.totalorder %s17, 1
        %s223 = scalar_select %p222, %s17, 1
        %s224 = scalar_lea.vmem %s3, %s223
      $region32: #{tpu_custom_call.1} parent=15 // pred_fallthru
        _
    $region16: #{tpu_custom_call.1} parent=5 // pred_fallthru
      _
    %p225 = scmp.le.s32.totalorder 1, %s10
    %p226 = scmp.lt.s32.totalorder %s10, 55
    %p227 = pnand %p225, %p226
    %p228 = pneg %p227
    // Predicated region
    $region33: #{tpu_custom_call.1} parent=5 // pred_check
      _
    $region34: #{tpu_custom_call.1} parent=5 // pred_check_branch
      %230 = sbr.rel (%p227) target = $region36
    $region35: #{tpu_custom_call.1} parent=5 // pred_region
      %s231 = ssub.s32 %s10, 1
      %p232 = scmp.lt.s32.totalorder %s20, 1
      %s233 = scalar_select %p232, %s20, 1
      %p234 = scmp.lt.s32.totalorder %s22, 0
      %s235 = scalar_select %p234, %s22, 0
      %s236 = sadd.s32 %s235, %s233
      %s237 = smul.addr %s236, 8
      %s238 = scalar_lea.vmem %s0, %s237
      %p239 = pneg %p57
      %p240 = pneg %p54
      %p241 = scmp.lt.s32.totalorder %s20, 1
      %s242 = scalar_select %p241, %s20, 1
      %p243 = scmp.lt.s32.totalorder %s21, 26
      %s244 = scalar_select %p243, %s21, 26
      %s245 = smul.addr %s242, 27
      %s246 = sadd.s32 %s244, %s245
      %s247 = smul.addr %s246, 4
      %s248 = scalar_lea.vmem %s1, %s247
      %p249 = pneg %p85
      %p250 = pneg %p82
      %p251 = scmp.lt.s32.totalorder %s20, 1
      %s252 = scalar_select %p251, %s20, 1
      %p253 = scmp.lt.s32.totalorder %s22, 0
      %s254 = scalar_select %p253, %s22, 0
      %s255 = sadd.s32 %s254, %s252
      %s256 = smul.addr %s255, 8
      %s257 = scalar_lea.vmem %s2, %s256
      %p258 = pneg %p113
      %p259 = pneg %p110
      %p260 = scmp.lt.s32.totalorder %s20, 1
      %s261 = scalar_select %p260, %s20, 1
      %s262 = scalar_lea.vmem %s3, %s261
      %p263 = pneg %p139
      %p264 = pneg %p136
      %p265 = pneg %p169
      %p266 = pneg %p166
      %p267 = scmp.lt.s32.totalorder %s20, 1
      %s268 = scalar_select %p267, %s20, 1
      %p269 = scmp.lt.s32.totalorder %s21, 26
      %s270 = scalar_select %p269, %s21, 26
      %p271 = scmp.lt.s32.totalorder %s22, 0
      %s272 = scalar_select %p271, %s22, 0
      %s273 = sadd.s32 %s272, %s270
      %s274 = smul.addr %s268, 27
      %s275 = sadd.s32 %s273, %s274
      %s276 = smul.addr %s275, 2
      %s277 = scalar_lea.vmem %s4, %s276
      %p278 = scmp.lt.s32.totalorder %s20, 1
      %s279 = scalar_select %p278, %s20, 1
      %p280 = scmp.lt.s32.totalorder %s22, 0
      %s281 = scalar_select %p280, %s22, 0
      %s282 = sadd.s32 %s281, %s279
      %s283 = smul.addr %s282, 8
      %s284 = scalar_lea.vmem %s0, %s283
      %p285 = scmp.lt.s32.totalorder %s20, 1
      %s286 = scalar_select %p285, %s20, 1
      %p287 = scmp.lt.s32.totalorder %s21, 26
      %s288 = scalar_select %p287, %s21, 26
      %s289 = smul.addr %s286, 27
      %s290 = sadd.s32 %s288, %s289
      %s291 = smul.addr %s290, 4
      %s292 = scalar_lea.vmem %s1, %s291
      %p293 = scmp.lt.s32.totalorder %s20, 1
      %s294 = scalar_select %p293, %s20, 1
      %p295 = scmp.lt.s32.totalorder %s22, 0
      %s296 = scalar_select %p295, %s22, 0
      %s297 = sadd.s32 %s296, %s294
      %s298 = smul.addr %s297, 8
      %s299 = scalar_lea.vmem %s2, %s298
      %p300 = scmp.lt.s32.totalorder %s20, 1
      %s301 = scalar_select %p300, %s20, 1
      %s302 = scalar_lea.vmem %s3, %s301
      %p303 = scmp.lt.s32.totalorder %s20, 1
      %s304 = scalar_select %p303, %s20, 1
      %p305 = scmp.lt.s32.totalorder %s21, 26
      %s306 = scalar_select %p305, %s21, 26
      %p307 = scmp.lt.s32.totalorder %s22, 0
      %s308 = scalar_select %p307, %s22, 0
      %s309 = sadd.s32 %s308, %s306
      %s310 = smul.addr %s304, 27
      %s311 = sadd.s32 %s309, %s310
      %s312 = smul.addr %s311, 2
      %s313 = scalar_lea.vmem %s4, %s312
      %v316 = vld [vmem:[%s284] sm:$0xff]
      %v317 = vld [vmem:[%s292] sm:$0x7]
      %v318 = vlaneseq
      %v319 = vshrl.u32 %v318, 7
      %v320 = vsub.s32 0, %v319
      %v321 = vrot.slane %v317, %v320
      %323 = vset.pattern.permute.xlu0 0
      %324 = vperm.xlu0 %323, %v316
      %v325 = vpop.permute.xlu0 %324
      %v327 = vsub.f32 %v321, %v325
      %v328 = vmul.f32 %v327, %v327
      %v329 = vadd.f32 %v328, 0.0
      %v330 = vlaneseq
      %v331 = vshrl.u32 %v330, 7
      %v332 = vsub.s32 1, %v331
      %v333 = vrot.slane %v317, %v332
      %334 = vset.pattern.permute.xlu0 1
      %335 = vperm.xlu0 %334, %v316
      %v336 = vpop.permute.xlu0 %335
      %v338 = vsub.f32 %v333, %v336
      %v339 = vmul.f32 %v338, %v338
      %v340 = vadd.f32 %v329, %v339
      %v341 = vlaneseq
      %v342 = vshrl.u32 %v341, 7
      %v343 = vsub.s32 2, %v342
      %v344 = vrot.slane %v317, %v343
      %345 = vset.pattern.permute.xlu0 2
      %346 = vperm.xlu0 %345, %v316
      %v347 = vpop.permute.xlu0 %346
      %v349 = vsub.f32 %v344, %v347
      %v350 = vmul.f32 %v349, %v349
      %v351 = vadd.f32 %v340, %v350
      %v352 = vld [vmem:[%s299] sm:$0xff]
      %vm353 = vcmp.gt.s32.totalorder %v352, 0
      %v354 = vld [vmem:[%s302] sm:$0x1]
      %vm355 = vcmp.gt.s32.totalorder %v354, 0
      %vm356 = vcmp.le.f32.partialorder %v351, 9.0
      %v357 = vsel %vm353, 1, 0
      %358 = vset.pattern.permute.xlu0 0
      %359 = vperm.xlu0 %358, %v357
      %v360 = vpop.permute.xlu0 %359
      %vm361 = vcmp.eq.s32.totalorder %v360, 1
      %vm362 = vmand %vm356, %vm361
      %v363 = vsel %vm355, 1, 0
      %v364 = vlaneseq
      %v365 = vshrl.u32 %v364, 7
      %v366 = vsub.s32 0, %v365
      %v367 = vrot.slane %v363, %v366
      %vm368 = vcmp.eq.s32.totalorder %v367, 1
      %vm369 = vmand %vm362, %vm368
      %p370 = scmp.eq.s32.totalorder %s21, 13
      // Predicated region
      $region37: #{tpu_custom_call.1} parent=35 // pred_check
        %p371 = pneg %p370
      $region38: #{tpu_custom_call.1} parent=35 // pred_check_branch
        %373 = sbr.rel (%p371) target = $region40
      $region39: #{tpu_custom_call.1} parent=35 // pred_region
        %s374 = smul.u32 %s22, 8
        %v375 = vlaneseq
        %v376 = vshrl.u32 %v375, 7
        %v377 = vstv %s374
        %v378 = vadd.s32 %v377, %v376
        %v379 = vlaneseq
        %v380 = vand.u32 %v379, 127
        %vm381 = vcmp.ne.s32.totalorder %v378, %v380
        %vm382 = vmand %vm369, %vm381
        %vm383 = vmpackc.low %vm382, %vm382
        %vm384 = vmpackc.even %vm383, %vm383
        %v385 = vsel %vm384, 16843009, 0
        %vm386 = vcmask 58368
        %387 = vst.msk [vmem:[%s313] sm:$0x3] %vm386, %v385
      $region40: #{tpu_custom_call.1} parent=35 // pred_fallthru
        _
      %p388 = scmp.ne.s32.totalorder %s21, 13
      // Predicated region
      $region41: #{tpu_custom_call.1} parent=35 // pred_check
        %p389 = pneg %p388
      $region42: #{tpu_custom_call.1} parent=35 // pred_check_branch
        %391 = sbr.rel (%p389) target = $region44
      $region43: #{tpu_custom_call.1} parent=35 // pred_region
        %vm392 = vmpackc.low %vm369, %vm369
        %vm393 = vmpackc.even %vm392, %vm392
        %v394 = vsel %vm393, 16843009, 0
        %vm395 = vcmask 58368
        %396 = vst.msk [vmem:[%s313] sm:$0x3] %vm395, %v394
      $region44: #{tpu_custom_call.1} parent=35 // pred_fallthru
        _
      %p397 = scmp.lt.s32.totalorder %s20, 1
      %s398 = scalar_select %p397, %s20, 1
      %p399 = scmp.lt.s32.totalorder %s21, 26
      %s400 = scalar_select %p399, %s21, 26
      %p401 = scmp.lt.s32.totalorder %s22, 0
      %s402 = scalar_select %p401, %s22, 0
      %s403 = sadd.s32 %s402, %s400
      %s404 = smul.addr %s398, 27
      %s405 = sadd.s32 %s403, %s404
      %s406 = smul.addr %s405, 2
      %s407 = scalar_lea.vmem %s4, %s406
      // Predicated region
      $region45: #{tpu_custom_call.1} parent=35 // pred_check
        %p408 = pneg %p166
      $region46: #{tpu_custom_call.1} parent=35 // pred_check_branch
        %410 = sbr.rel (%p408) target = $region48
      $region47: #{tpu_custom_call.1} parent=35 // pred_region
        _
      $region48: #{tpu_custom_call.1} parent=35 // pred_fallthru
        _
    $region36: #{tpu_custom_call.1} parent=5 // pred_fallthru
      _
    %p411 = scmp.le.s32.totalorder 2, %s10
    // Predicated region
    $region49: #{tpu_custom_call.1} parent=5 // pred_check
      %p412 = pneg %p411
    $region50: #{tpu_custom_call.1} parent=5 // pred_check_branch
      %414 = sbr.rel (%p412) target = $region52
    $region51: #{tpu_custom_call.1} parent=5 // pred_region
      %s415 = ssub.s32 %s10, 2
      // Predicated region
      $region53: #{tpu_custom_call.1} parent=51 // pred_check
        %p416 = pneg %p172
      $region54: #{tpu_custom_call.1} parent=51 // pred_check_branch
        %418 = sbr.rel (%p416) target = $region56
      $region55: #{tpu_custom_call.1} parent=51 // pred_region
        %p419 = scmp.lt.s32.totalorder %s23, 1
        %s420 = scalar_select %p419, %s23, 1
        %p421 = scmp.lt.s32.totalorder %s24, 26
        %s422 = scalar_select %p421, %s24, 26
        %p423 = scmp.lt.s32.totalorder %s25, 0
        %s424 = scalar_select %p423, %s25, 0
        %s425 = sadd.s32 %s424, %s422
        %s426 = smul.addr %s420, 27
        %s427 = sadd.s32 %s425, %s426
        %s428 = smul.addr %s427, 2
        %s429 = scalar_lea.vmem %s4, %s428
      $region56: #{tpu_custom_call.1} parent=51 // pred_fallthru
        _
    $region52: #{tpu_custom_call.1} parent=5 // pred_fallthru
      _
  $region6: #{tpu_custom_call.1} parent=0 // loop_footer
    %s14 = sadd.s32 1, %s10
  $region7: #{tpu_custom_call.1} parent=0 // loop_footer_branch
    %9 = sbr.rel target = $region3
  $region8: #{tpu_custom_call.1} parent=0 // loop_exit
    _

</llo_original>
